<compile_context>
chip_gen: v7x
topology: tpu7x:2x2x1
jax: 0.10.0
libtpu: 0.0.40
codegen_flags: <defaults>
</compile_context>

<pallas_src>
import functools

import jax
import jax.numpy as jnp
from jax.experimental import pallas as pl
from jax.experimental.pallas import tpu as pltpu

# ---- synthetic cfg ---------------------------------------------------------
D       = 32                 # cfg.fc.dims[0] before modification (latent dim of x)
CMD_IN  = 2                  # cmd input dim (forced by nn.Linear(2, dims[0]))
FC_DIMS = (2 * D, 64, 32, 6) # cfg.fc.dims after append(6) and dims[0] *= 2
F_OUT   = FC_DIMS[-1]        # 6
PAD     = 128                # one lane tile


def _round_up(n, m):
    return ((n + m - 1) // m) * m


def _act_dtype():
    """bf16 VPU/EUP exists on v6e/v7x; keep bias+tanh in f32 on v5e/older."""
    try:
        kind = jax.devices()[0].device_kind.lower()
    except Exception:
        return jnp.float32
    if ("v6" in kind) or ("v7" in kind) or ("tpu7" in kind):
        return jnp.bfloat16
    return jnp.float32


# ---- kernel ----------------------------------------------------------------
def fkd_kernel(x_ref, cmd_ref, w_ref, b_ref, out_ref, *, act_dtype):
    f32, bf16 = jnp.float32, jnp.bfloat16

    def mm(a, k):
        # bf16 MXU operands, f32 accumulation.
        return jnp.dot(a.astype(bf16), w_ref[k], preferred_element_type=f32)

    def act(v):
        # bias-add already done in f32; tanh in bf16 on v6e/v7x, f32 on v5e.
        return jnp.tanh(v.astype(act_dtype))

    # Build the 128-lane bf16 input slab in-kernel: [x | cmd | zeros].
    x = x_ref[...].astype(bf16)                       # (bm, D)
    cmd = cmd_ref[...].astype(bf16)                   # (bm, CMD_IN)
    fill = jnp.zeros((x.shape[0], PAD - D - CMD_IN), bf16)
    slab = jnp.concatenate([x, cmd, fill], axis=-1)   # (bm, 128) bf16

    # --- map_cmd MLP: 2 -> D -> 2D -> D (Tanh between layers) ---------------
    h = act(mm(slab, 0) + b_ref[0])       # W0 rows D:D+2 hold cw0 -> cmd @ cw0
    h = act(mm(h, 1) + b_ref[1])
    c = mm(h, 2) + b_ref[2]               # last map_cmd layer: no activation

    # --- fc on concat([x, c]) : fused via split first-layer weight ----------
    # TODO(synk): nn.Dropout(0.3) is identity in eval mode; training-mode
    # stochastic mask (pltpu.prng_seed + prng_random_bits) intentionally not emitted.
    z = mm(slab, 3) + mm(c, 4) + b_ref[3]  # x @ fw0[:D] + c @ fw0[D:] + fb0
    z = act(z)
    z = act(mm(z, 5) + b_ref[4])
    z = mm(z, 6) + b_ref[5]

    out_ref[...] = z.astype(out_ref.dtype)


# ---- wrapper ---------------------------------------------------------------
def fkd_forward(x, cmd, packed_params, block_rows=2048):
    """x: (B, D), cmd: (B, CMD_IN) in f32 or bf16 (bf16 preferred: half the DMA)."""
    w_stk, b_stk = packed_params
    B = x.shape[0]

    # Only pad rows when B is not sublane-aligned (tiny, rare in practice).
    Bp = _round_up(B, 8)
    if Bp != B:
        x = jnp.pad(x, ((0, Bp - B), (0, 0)))
        cmd = jnp.pad(cmd, ((0, Bp - B), (0, 0)))

    # Largest sublane-aligned batch tile, but keep >=2 grid steps when B allows
    # so v7x's two TensorCores both get work; ragged last block handled by Pallas.
    bm = min(_round_up(block_rows, 8), max(8, _round_up(pl.cdiv(Bp, 2), 8)))
    grid = (pl.cdiv(Bp, bm),)

    in_specs = [
        pl.BlockSpec((bm, D), lambda i: (i, 0)),         # x, streamed, unpadded lanes
        pl.BlockSpec((bm, CMD_IN), lambda i: (i, 0)),    # cmd, streamed, unpadded lanes
        pl.BlockSpec((7, PAD, PAD), lambda i: (0, 0, 0)),  # weight stack, VMEM-resident
        pl.BlockSpec((6, 1, PAD), lambda i: (0, 0, 0)),    # bias stack, VMEM-resident
    ]
    out_spec = pl.BlockSpec((bm, PAD), lambda i: (i, 0))   # lane-dense bf16 store

    flops_per_row = 2 * (CMD_IN * D + D * 2 * D + 2 * D * D
                         + FC_DIMS[0] * FC_DIMS[1]
                         + FC_DIMS[1] * FC_DIMS[2]
                         + FC_DIMS[2] * FC_DIMS[3])
    trans_per_row = D + 2 * D + FC_DIMS[1] + FC_DIMS[2]
    bytes_accessed = (x.size * x.dtype.itemsize + cmd.size * cmd.dtype.itemsize
                      + Bp * PAD * 2                      # bf16 output slab
                      + w_stk.size * w_stk.dtype.itemsize
                      + b_stk.size * b_stk.dtype.itemsize)
    cost = pl.CostEstimate(flops=int(Bp * flops_per_row),
                           transcendentals=int(Bp * trans_per_row),
                           bytes_accessed=int(bytes_accessed))

    kernel = functools.partial(fkd_kernel, act_dtype=_act_dtype())

    out_p = pl.pallas_call(
        kernel,
        out_shape=jax.ShapeDtypeStruct((Bp, PAD), jnp.bfloat16),
        grid=grid,
        in_specs=in_specs,
        out_specs=out_spec,
        compiler_params=pltpu.CompilerParams(
            dimension_semantics=("parallel",)),
        cost_estimate=cost,
    )(x, cmd, w_stk, b_stk)

    return out_p[:B, :F_OUT].astype(jnp.float32)


# ---- params ----------------------------------------------------------------
def init_params(key):
    std = 0.02
    ks = jax.random.split(key, 6)

    def lin(k, din, dout):
        w = jax.random.normal(k, (din, dout), jnp.float32) * std
        b = jnp.zeros((dout,), jnp.float32)
        return w, b

    cw0, cb0 = lin(ks[0], CMD_IN, D)
    cw1, cb1 = lin(ks[1], D, 2 * D)
    cw2, cb2 = lin(ks[2], 2 * D, D)
    fw0, fb0 = lin(ks[3], FC_DIMS[0], FC_DIMS[1])
    fw1, fb1 = lin(ks[4], FC_DIMS[1], FC_DIMS[2])
    fw2, fb2 = lin(ks[5], FC_DIMS[2], FC_DIMS[3])
    return (cw0, cb0, cw1, cb1, cw2, cb2, fw0, fb0, fw1, fb1, fw2, fb2)


def pack_params(params):
    """Stack all weights into one (7,128,128) bf16 slab and biases into one
    (6,1,128) f32 slab. Layout matches the in-kernel input slab [x | cmd | 0]:
      W[0] rows D:D+2  = cw0           (map_cmd L0, consumes cmd lanes)
      W[1] rows 0:D    = cw1
      W[2] rows 0:2D   = cw2
      W[3] rows 0:D    = fw0[:D]       (fc L0, x part of the fused concat)
      W[4] rows 0:D    = fw0[D:]       (fc L0, c part of the fused concat)
      W[5] rows 0:64   = fw1
      W[6] rows 0:32   = fw2
    All other rows/cols are zero, so the padded lanes contribute nothing."""
    (cw0, cb0, cw1, cb1, cw2, cb2, fw0, fb0, fw1, fb1, fw2, fb2) = params

    W = jnp.zeros((7, PAD, PAD), jnp.float32)
    W = W.at[0, D:D + CMD_IN, :D].set(cw0)
    W = W.at[1, :D, :2 * D].set(cw1)
    W = W.at[2, :2 * D, :D].set(cw2)
    W = W.at[3, :D, :FC_DIMS[1]].set(fw0[:D])
    W = W.at[4, :D, :FC_DIMS[1]].set(fw0[D:])
    W = W.at[5, :FC_DIMS[1], :FC_DIMS[2]].set(fw1)
    W = W.at[6, :FC_DIMS[2], :FC_DIMS[3]].set(fw2)
    W = W.astype(jnp.bfloat16)

    Bst = jnp.zeros((6, 1, PAD), jnp.float32)
    for i, b in enumerate((cb0, cb1, cb2, fb0, fb1, fb2)):
        Bst = Bst.at[i, 0, :b.shape[0]].set(b)

    return W, Bst


# ---- reference -------------------------------------------------------------
def fkd_reference(x, cmd, params):
    (cw0, cb0, cw1, cb1, cw2, cb2, fw0, fb0, fw1, fb1, fw2, fb2) = params
    c = jnp.tanh(cmd @ cw0 + cb0)
    c = jnp.tanh(c @ cw1 + cb1)
    c = c @ cw2 + cb2
    z = jnp.concatenate([x, c], axis=-1)     # dropout is identity in eval mode
    z = jnp.tanh(z @ fw0 + fb0)
    z = jnp.tanh(z @ fw1 + fb1)
    return z @ fw2 + fb2


if __name__ == "__main__":
    B = 2
    key = jax.random.PRNGKey(0)
    kx, kc, kp = jax.random.split(key, 3)

    x_f32 = jax.random.normal(kx, (B, D), jnp.float32)
    cmd_f32 = jax.random.normal(kc, (B, CMD_IN), jnp.float32)

    params = init_params(kp)
    packed = pack_params(params)

    # Production path streams bf16 activations; round the inputs once here.
    x_bf16 = x_f32.astype(jnp.bfloat16)
    cmd_bf16 = cmd_f32.astype(jnp.bfloat16)

    out = fkd_forward(x_bf16, cmd_bf16, packed)
    out = jax.block_until_ready(out)

    ref = fkd_reference(x_bf16.astype(jnp.float32),
                        cmd_bf16.astype(jnp.float32), params)
    assert out.shape == (B, F_OUT), out.shape
    # bf16 MXU operands / bf16 output slab -> loosened tolerance vs pure-f32 ref.
    assert jnp.allclose(out, ref, atol=2e-2, rtol=2e-2), (out, ref)

    print("KERNEL_OK")
</pallas_src>

<mosaic_0001>
module attributes {stable_mosaic.version = 11 : i64} {
  func.func @fkd_kernel(%arg0: i32, %arg1: memref<8x32xbf16, #tpu.memory_space<vmem>>, %arg2: memref<8x2xbf16, #tpu.memory_space<vmem>>, %arg3: memref<7x128x128xbf16, #tpu.memory_space<vmem>>, %arg4: memref<6x1x128xf32, #tpu.memory_space<vmem>>, %arg5: memref<8x128xbf16, #tpu.memory_space<vmem>>) attributes {dimension_semantics = [#tpu.dimension_semantics<parallel>], iteration_bounds = array<i64: 1>, scalar_prefetch = 0 : i64, scratch_operands = 0 : i64, tpu.core_type = #tpu.core_type<tc>, window_params = [{transform_indices = @transform_0, window_bounds = array<i64: 8, 32>}, {transform_indices = @transform_1, window_bounds = array<i64: 8, 2>}, {pipeline_mode = #tpu.pipeline_mode<synchronous>, transform_indices = @transform_2, window_bounds = array<i64: 7, 128, 128>}, {pipeline_mode = #tpu.pipeline_mode<synchronous>, transform_indices = @transform_3, window_bounds = array<i64: 6, 1, 128>}, {transform_indices = @transform_4, window_bounds = array<i64: 8, 128>}]} {
    %c0 = arith.constant 0 : index
    %c0_0 = arith.constant 0 : index
    %0 = vector.load %arg1[%c0, %c0_0] : memref<8x32xbf16, #tpu.memory_space<vmem>>, vector<8x32xbf16>
    %c0_1 = arith.constant 0 : index
    %c0_2 = arith.constant 0 : index
    %1 = vector.load %arg2[%c0_1, %c0_2] : memref<8x2xbf16, #tpu.memory_space<vmem>>, vector<8x2xbf16>
    %cst = arith.constant 0.000000e+00 : bf16
    %2 = vector.broadcast %cst : bf16 to vector<8x94xbf16>
    %3 = tpu.concatenate %0, %1, %2 in 1 : vector<8x32xbf16>, vector<8x2xbf16>, vector<8x94xbf16> -> vector<8x128xbf16>
    %c0_3 = arith.constant 0 : index
    %c0_4 = arith.constant 0 : index
    %c0_5 = arith.constant 0 : index
    %4 = vector.load %arg3[%c0_3, %c0_4, %c0_5] : memref<7x128x128xbf16, #tpu.memory_space<vmem>>, vector<1x128x128xbf16>
    %5 = vector.shape_cast %4 : vector<1x128x128xbf16> to vector<128x128xbf16>
    %cst_6 = arith.constant dense<0.000000e+00> : vector<8x128xf32>
    %6 = tpu.matmul %3, %5, %cst_6 {dimension_numbers = #tpu.dot_dimension_numbers<[1], [0], [0], [1], [0, 0, 1, 1], [], []>} : vector<8x128xbf16>, vector<128x128xbf16>, vector<8x128xf32> -> vector<8x128xf32>
    %c0_7 = arith.constant 0 : index
    %c0_8 = arith.constant 0 : index
    %c0_9 = arith.constant 0 : index
    %7 = vector.load %arg4[%c0_7, %c0_8, %c0_9] : memref<6x1x128xf32, #tpu.memory_space<vmem>>, vector<1x1x128xf32>
    %8 = vector.shape_cast %7 : vector<1x1x128xf32> to vector<1x128xf32>
    %9 = vector.broadcast %8 : vector<1x128xf32> to vector<8x128xf32>
    %10 = arith.addf %6, %9 : vector<8x128xf32>
    %11 = math.tanh %10 : vector<8x128xf32>
    %12 = arith.truncf %11 : vector<8x128xf32> to vector<8x128xbf16>
    %c1 = arith.constant 1 : index
    %c0_10 = arith.constant 0 : index
    %c0_11 = arith.constant 0 : index
    %13 = vector.load %arg3[%c1, %c0_10, %c0_11] : memref<7x128x128xbf16, #tpu.memory_space<vmem>>, vector<1x128x128xbf16>
    %14 = vector.shape_cast %13 : vector<1x128x128xbf16> to vector<128x128xbf16>
    %cst_12 = arith.constant dense<0.000000e+00> : vector<8x128xf32>
    %15 = tpu.matmul %12, %14, %cst_12 {dimension_numbers = #tpu.dot_dimension_numbers<[1], [0], [0], [1], [0, 0, 1, 1], [], []>} : vector<8x128xbf16>, vector<128x128xbf16>, vector<8x128xf32> -> vector<8x128xf32>
    %c1_13 = arith.constant 1 : index
    %c0_14 = arith.constant 0 : index
    %c0_15 = arith.constant 0 : index
    %16 = vector.load %arg4[%c1_13, %c0_14, %c0_15] : memref<6x1x128xf32, #tpu.memory_space<vmem>>, vector<1x1x128xf32>
    %17 = vector.shape_cast %16 : vector<1x1x128xf32> to vector<1x128xf32>
    %18 = vector.broadcast %17 : vector<1x128xf32> to vector<8x128xf32>
    %19 = arith.addf %15, %18 : vector<8x128xf32>
    %20 = math.tanh %19 : vector<8x128xf32>
    %21 = arith.truncf %20 : vector<8x128xf32> to vector<8x128xbf16>
    %c2 = arith.constant 2 : index
    %c0_16 = arith.constant 0 : index
    %c0_17 = arith.constant 0 : index
    %22 = vector.load %arg3[%c2, %c0_16, %c0_17] : memref<7x128x128xbf16, #tpu.memory_space<vmem>>, vector<1x128x128xbf16>
    %23 = vector.shape_cast %22 : vector<1x128x128xbf16> to vector<128x128xbf16>
    %cst_18 = arith.constant dense<0.000000e+00> : vector<8x128xf32>
    %24 = tpu.matmul %21, %23, %cst_18 {dimension_numbers = #tpu.dot_dimension_numbers<[1], [0], [0], [1], [0, 0, 1, 1], [], []>} : vector<8x128xbf16>, vector<128x128xbf16>, vector<8x128xf32> -> vector<8x128xf32>
    %c2_19 = arith.constant 2 : index
    %c0_20 = arith.constant 0 : index
    %c0_21 = arith.constant 0 : index
    %25 = vector.load %arg4[%c2_19, %c0_20, %c0_21] : memref<6x1x128xf32, #tpu.memory_space<vmem>>, vector<1x1x128xf32>
    %26 = vector.shape_cast %25 : vector<1x1x128xf32> to vector<1x128xf32>
    %27 = vector.broadcast %26 : vector<1x128xf32> to vector<8x128xf32>
    %28 = arith.addf %24, %27 : vector<8x128xf32>
    %c3 = arith.constant 3 : index
    %c0_22 = arith.constant 0 : index
    %c0_23 = arith.constant 0 : index
    %29 = vector.load %arg3[%c3, %c0_22, %c0_23] : memref<7x128x128xbf16, #tpu.memory_space<vmem>>, vector<1x128x128xbf16>
    %30 = vector.shape_cast %29 : vector<1x128x128xbf16> to vector<128x128xbf16>
    %cst_24 = arith.constant dense<0.000000e+00> : vector<8x128xf32>
    %31 = tpu.matmul %3, %30, %cst_24 {dimension_numbers = #tpu.dot_dimension_numbers<[1], [0], [0], [1], [0, 0, 1, 1], [], []>} : vector<8x128xbf16>, vector<128x128xbf16>, vector<8x128xf32> -> vector<8x128xf32>
    %32 = arith.truncf %28 : vector<8x128xf32> to vector<8x128xbf16>
    %c4 = arith.constant 4 : index
    %c0_25 = arith.constant 0 : index
    %c0_26 = arith.constant 0 : index
    %33 = vector.load %arg3[%c4, %c0_25, %c0_26] : memref<7x128x128xbf16, #tpu.memory_space<vmem>>, vector<1x128x128xbf16>
    %34 = vector.shape_cast %33 : vector<1x128x128xbf16> to vector<128x128xbf16>
    %cst_27 = arith.constant dense<0.000000e+00> : vector<8x128xf32>
    %35 = tpu.matmul %32, %34, %cst_27 {dimension_numbers = #tpu.dot_dimension_numbers<[1], [0], [0], [1], [0, 0, 1, 1], [], []>} : vector<8x128xbf16>, vector<128x128xbf16>, vector<8x128xf32> -> vector<8x128xf32>
    %36 = arith.addf %31, %35 : vector<8x128xf32>
    %c3_28 = arith.constant 3 : index
    %c0_29 = arith.constant 0 : index
    %c0_30 = arith.constant 0 : index
    %37 = vector.load %arg4[%c3_28, %c0_29, %c0_30] : memref<6x1x128xf32, #tpu.memory_space<vmem>>, vector<1x1x128xf32>
    %38 = vector.shape_cast %37 : vector<1x1x128xf32> to vector<1x128xf32>
    %39 = vector.broadcast %38 : vector<1x128xf32> to vector<8x128xf32>
    %40 = arith.addf %36, %39 : vector<8x128xf32>
    %41 = math.tanh %40 : vector<8x128xf32>
    %42 = arith.truncf %41 : vector<8x128xf32> to vector<8x128xbf16>
    %c5 = arith.constant 5 : index
    %c0_31 = arith.constant 0 : index
    %c0_32 = arith.constant 0 : index
    %43 = vector.load %arg3[%c5, %c0_31, %c0_32] : memref<7x128x128xbf16, #tpu.memory_space<vmem>>, vector<1x128x128xbf16>
    %44 = vector.shape_cast %43 : vector<1x128x128xbf16> to vector<128x128xbf16>
    %cst_33 = arith.constant dense<0.000000e+00> : vector<8x128xf32>
    %45 = tpu.matmul %42, %44, %cst_33 {dimension_numbers = #tpu.dot_dimension_numbers<[1], [0], [0], [1], [0, 0, 1, 1], [], []>} : vector<8x128xbf16>, vector<128x128xbf16>, vector<8x128xf32> -> vector<8x128xf32>
    %c4_34 = arith.constant 4 : index
    %c0_35 = arith.constant 0 : index
    %c0_36 = arith.constant 0 : index
    %46 = vector.load %arg4[%c4_34, %c0_35, %c0_36] : memref<6x1x128xf32, #tpu.memory_space<vmem>>, vector<1x1x128xf32>
    %47 = vector.shape_cast %46 : vector<1x1x128xf32> to vector<1x128xf32>
    %48 = vector.broadcast %47 : vector<1x128xf32> to vector<8x128xf32>
    %49 = arith.addf %45, %48 : vector<8x128xf32>
    %50 = math.tanh %49 : vector<8x128xf32>
    %51 = arith.truncf %50 : vector<8x128xf32> to vector<8x128xbf16>
    %c6 = arith.constant 6 : index
    %c0_37 = arith.constant 0 : index
    %c0_38 = arith.constant 0 : index
    %52 = vector.load %arg3[%c6, %c0_37, %c0_38] : memref<7x128x128xbf16, #tpu.memory_space<vmem>>, vector<1x128x128xbf16>
    %53 = vector.shape_cast %52 : vector<1x128x128xbf16> to vector<128x128xbf16>
    %cst_39 = arith.constant dense<0.000000e+00> : vector<8x128xf32>
    %54 = tpu.matmul %51, %53, %cst_39 {dimension_numbers = #tpu.dot_dimension_numbers<[1], [0], [0], [1], [0, 0, 1, 1], [], []>} : vector<8x128xbf16>, vector<128x128xbf16>, vector<8x128xf32> -> vector<8x128xf32>
    %c5_40 = arith.constant 5 : index
    %c0_41 = arith.constant 0 : index
    %c0_42 = arith.constant 0 : index
    %55 = vector.load %arg4[%c5_40, %c0_41, %c0_42] : memref<6x1x128xf32, #tpu.memory_space<vmem>>, vector<1x1x128xf32>
    %56 = vector.shape_cast %55 : vector<1x1x128xf32> to vector<1x128xf32>
    %57 = vector.broadcast %56 : vector<1x128xf32> to vector<8x128xf32>
    %58 = arith.addf %54, %57 : vector<8x128xf32>
    %59 = arith.truncf %58 : vector<8x128xf32> to vector<8x128xbf16>
    %c0_43 = arith.constant 0 : index
    %c0_44 = arith.constant 0 : index
    %60 = vector.load %arg5[%c0_43, %c0_44] : memref<8x128xbf16, #tpu.memory_space<vmem>>, vector<8x128xbf16>
    tpu.vector_store %arg5[%c0_43, %c0_44], %59 {strides = array<i32>} : memref<8x128xbf16, #tpu.memory_space<vmem>>, vector<8x128xbf16>,
    return
  }
  func.func @transform_0(%arg0: i32) -> (i32, i32) {
    %c0_i32 = arith.constant 0 : i32
    %c0_i32_0 = arith.constant 0 : i32
    return %arg0, %c0_i32 : i32, i32
  }
  func.func @transform_1(%arg0: i32) -> (i32, i32) {
    %c0_i32 = arith.constant 0 : i32
    %c0_i32_0 = arith.constant 0 : i32
    return %arg0, %c0_i32 : i32, i32
  }
  func.func @transform_2(%arg0: i32) -> (i32, i32, i32) {
    %c0_i32 = arith.constant 0 : i32
    %c0_i32_0 = arith.constant 0 : i32
    %c0_i32_1 = arith.constant 0 : i32
    %c0_i32_2 = arith.constant 0 : i32
    return %c0_i32, %c0_i32_0, %c0_i32_1 : i32, i32, i32
  }
  func.func @transform_3(%arg0: i32) -> (i32, i32, i32) {
    %c0_i32 = arith.constant 0 : i32
    %c0_i32_0 = arith.constant 0 : i32
    %c0_i32_1 = arith.constant 0 : i32
    %c0_i32_2 = arith.constant 0 : i32
    return %c0_i32, %c0_i32_0, %c0_i32_1 : i32, i32, i32
  }
  func.func @transform_4(%arg0: i32) -> (i32, i32) {
    %c0_i32 = arith.constant 0 : i32
    %c0_i32_0 = arith.constant 0 : i32
    return %arg0, %c0_i32 : i32, i32
  }
}

</mosaic_0001>

<llo_original>
// kernel: tpu_custom_call.1
$region0: #{tpu_custom_call.1}
  #allocation0 [shape = 'u32[]', space=smem, size = 0x4, offset = 0x4, fixed_abs, tag = 'smem constant byte address 0x4 - core index']
  #allocation1 [shape = 'u32[144,128]{1,0:T(1,128)}', space=vmem, size = 0x12000, scoped, tag = 'internal scratch']
  %s0 = inlined_call_operand.vmem [shape: bf16[8,32], index: 0, kind: input, shape index: {}]
  %s1 = inlined_call_operand.vmem [shape: bf16[8,2], index: 1, kind: input, shape index: {}]
  %s2 = inlined_call_operand.hbm [shape: bf16[7,128,128], index: 2, kind: input, shape index: {}]
  %s3 = inlined_call_operand.vmem [shape: f32[6,1,128], index: 3, kind: input, shape index: {}]
  %s4 = inlined_call_operand.hbm [shape: bf16[8,128], index: 4, kind: output, shape index: {}]
  %s5 = sld [smem:[#allocation0]]
  $region30: #{tpu_custom_call.1} parent=0
    _
  %s7 = ssub.s32 1, %s5
  %s8 = scalar_select 0, %s7, %s5
  $region1: #{tpu_custom_call.1} parent=0
    #allocation2 [shape = 'u8[229376]{0}', space=vmem, size = 0x38000, scoped, tag = 'input window, operand 2, single buffered']
    #allocation3 [shape = 's32[1]{0}', space=sflag, size = 0x4, scoped, tag = 'scoped memory for tpu_custom_call.1']
    #allocation4 [shape = 's32[1]{0}', space=sflag, size = 0x4, scoped, tag = 'scoped memory for tpu_custom_call.1']
    #allocation5 [shape = 'u8[2048]{0}', space=vmem, size = 0x800, scoped, tag = 'output window, operand 0, single buffered']
    %9 = vsyncpa [#allocation3], 0
    %10 = vsyncpa [#allocation4], 0
    // Predicated region
    $region2: #{tpu_custom_call.1} parent=1 // pred_check
      _
    $region3: #{tpu_custom_call.1} parent=1 // pred_check_branch
      %12 = sbr.rel (0) target = $region5
    $region4: #{tpu_custom_call.1} parent=1 // pred_region
      _
    $region5: #{tpu_custom_call.1} parent=1 // pred_fallthru
      _
    // Predicated region
    $region6: #{tpu_custom_call.1} parent=1 // pred_check
      _
    $region7: #{tpu_custom_call.1} parent=1 // pred_check_branch
      %14 = sbr.rel (0) target = $region9
    $region8: #{tpu_custom_call.1} parent=1 // pred_region
      _
    $region9: #{tpu_custom_call.1} parent=1 // pred_fallthru
      _
    // Predicated region
    $region10: #{tpu_custom_call.1} parent=1 // pred_check
      _
    $region11: #{tpu_custom_call.1} parent=1 // pred_check_branch
      %16 = sbr.rel (0) target = $region13
    $region12: #{tpu_custom_call.1} parent=1 // pred_region
      %s18 = ssub.s32 7168, 7168
      %19 = vsyncadd [#allocation3], %s18
      %s20 = sshll.u32 [#allocation2], 4
      %s21 = int_to_ptr.vmem [resolvable:$true] %s20
      %26 = dma.hbm_to_vmem [thread:$0]  %s2, 7168, %s21, [#allocation3], 64, 64, 4
    $region13: #{tpu_custom_call.1} parent=1 // pred_fallthru
      _
    // Predicated region
    $region14: #{tpu_custom_call.1} parent=1 // pred_check
      _
    $region15: #{tpu_custom_call.1} parent=1 // pred_check_branch
      %28 = sbr.rel (0) target = $region17
    $region16: #{tpu_custom_call.1} parent=1 // pred_region
      _
    $region17: #{tpu_custom_call.1} parent=1 // pred_fallthru
      _
    // Predicated region
    $region18: #{tpu_custom_call.1} parent=1 // pred_check
      _
    $region19: #{tpu_custom_call.1} parent=1 // pred_check_branch
      %30 = sbr.rel (0) target = $region21
    $region20: #{tpu_custom_call.1} parent=1 // pred_region
      %31 = dma.done [#allocation3], 7168
    $region21: #{tpu_custom_call.1} parent=1 // pred_fallthru
      _
    %v33 = vld [vmem:[%s0] sm:$0xf]
    %v34 = vld [vmem:[%s1] sm:$0xf]
    %v36 = vunpack.c.l.b16 %v34
    %v37 = vpack.c.b16 %v36, %v36
    %38 = vrot.lane.b32.xlu0 %v37, 32
    %v39 = vpop.permute.xlu0 %38
    %vm40 = vcmask 261120
    %v43 = vsel %vm40, %v33, %v39
    %vm44 = vcmask 277504
    %v46 = vsel %vm44, %v43, 0
    %v48 = vld [vmem:[#allocation2] sm:$0xf]
    %v49 = vld [vmem:[#allocation2 + $0x4] sm:$0xf]
    %v50 = vld [vmem:[#allocation2 + $0x8] sm:$0xf]
    %v51 = vld [vmem:[#allocation2 + $0xc] sm:$0xf]
    %v52 = vld [vmem:[#allocation2 + $0x10] sm:$0xf]
    %v53 = vld [vmem:[#allocation2 + $0x14] sm:$0xf]
    %v54 = vld [vmem:[#allocation2 + $0x18] sm:$0xf]
    %v55 = vld [vmem:[#allocation2 + $0x1c] sm:$0xf]
    %v56 = vld [vmem:[#allocation2 + $0x20] sm:$0xf]
    %v57 = vld [vmem:[#allocation2 + $0x24] sm:$0xf]
    %v58 = vld [vmem:[#allocation2 + $0x28] sm:$0xf]
    %v59 = vld [vmem:[#allocation2 + $0x2c] sm:$0xf]
    %v60 = vld [vmem:[#allocation2 + $0x30] sm:$0xf]
    %v61 = vld [vmem:[#allocation2 + $0x34] sm:$0xf]
    %v62 = vld [vmem:[#allocation2 + $0x38] sm:$0xf]
    %v63 = vld [vmem:[#allocation2 + $0x3c] sm:$0xf]
    %v64 = vld [vmem:[%s3] sm:$0x1]
    %v66 = vlaneseq
    %v67 = vshrl.u32 %v66, 7
    %v68 = vsub.s32 0, %v67
    %v69 = vrot.slane %v64, %v68
    %v87 = vunpack.c.l.b16 %v48
    %v88 = vunpack.c.l.b16 %v49
    %v89 = vunpack.c.l.b16 %v50
    %v90 = vunpack.c.l.b16 %v51
    %v91 = vunpack.c.l.b16 %v52
    %v92 = vunpack.c.l.b16 %v53
    %v93 = vunpack.c.l.b16 %v54
    %v94 = vunpack.c.l.b16 %v55
    %v95 = vunpack.c.l.b16 %v56
    %v96 = vunpack.c.l.b16 %v57
    %v97 = vunpack.c.l.b16 %v58
    %v98 = vunpack.c.l.b16 %v59
    %v99 = vunpack.c.l.b16 %v60
    %v100 = vunpack.c.l.b16 %v61
    %v101 = vunpack.c.l.b16 %v62
    %v102 = vunpack.c.l.b16 %v63
    %v103 = vpack.c.b16 %v88, %v87
    %v104 = vpack.c.b16 %v90, %v89
    %v105 = vpack.c.b16 %v92, %v91
    %v106 = vpack.c.b16 %v94, %v93
    %v107 = vpack.c.b16 %v96, %v95
    %v108 = vpack.c.b16 %v98, %v97
    %v109 = vpack.c.b16 %v100, %v99
    %v110 = vpack.c.b16 %v102, %v101
    %119 = vmatprep.subr.bf16.mxu0 0
    %120 = vmatpush1.bf16.msra.mxu0 %v103
    %121 = vmatprep.subr.bf16.mxu0 0
    %122 = vmatpush1.bf16.msra.mxu0 %v104
    %123 = vmatprep.subr.bf16.mxu0 0
    %124 = vmatpush1.bf16.msra.mxu0 %v105
    %125 = vmatprep.subr.bf16.mxu0 0
    %126 = vmatpush1.bf16.msra.mxu0 %v106
    %127 = vmatprep.subr.bf16.mxu0 0
    %128 = vmatpush1.bf16.msra.mxu0 %v107
    %129 = vmatprep.subr.bf16.mxu0 0
    %130 = vmatpush1.bf16.msra.mxu0 %v108
    %131 = vmatprep.subr.bf16.mxu0 0
    %132 = vmatpush1.bf16.msra.mxu0 %v109
    %133 = vmatprep.subr.bf16.mxu0 0
    %134 = vmatpush1.bf16.msra.mxu0 %v110
    %135 = vmatprep.subr.bf16.mxu0 0
    %136 = vmatpush1.bf16.msra.mxu0 0
    %137 = vmatprep.subr.bf16.mxu0 0
    %138 = vmatpush1.bf16.msra.mxu0 0
    %139 = vmatprep.subr.bf16.mxu0 0
    %140 = vmatpush1.bf16.msra.mxu0 0
    %141 = vmatprep.subr.bf16.mxu0 0
    %142 = vmatpush1.bf16.msra.mxu0 0
    %143 = vmatprep.subr.bf16.mxu0 0
    %144 = vmatpush1.bf16.msra.mxu0 0
    %145 = vmatprep.subr.bf16.mxu0 0
    %146 = vmatpush1.bf16.msra.mxu0 0
    %147 = vmatprep.subr.bf16.mxu0 0
    %148 = vmatpush1.bf16.msra.mxu0 0
    %149 = vmatprep.subr.bf16.mxu0 0
    %150 = vmatpush1.bf16.msra.mxu0 0
    %151 = vmatprep.mubr.bf16.mxu0 0
    %152 = vmatmul.mubr.bf16.gmra.mrb[0].mxu0 %v46
    %v153 = vpop.f32.mrb[0].mxu0
    %v154 = vadd.f32 %v69, %v153
    %v155 = vpop.f32.mrb[0].mxu0
    %v156 = vpop.f32.mrb[0].mxu0
    %v157 = vpop.f32.mrb[0].mxu0
    %158 = vdwg.mxu0
    %v159 = vtanh.pop %v154
    %v160 = vpack.c.bf16 %v159, %v159
    %s161 = scalar_lea.vmem [#allocation2], 64
    %v162 = vld [vmem:[%s161] sm:$0xf]
    %v163 = vld [vmem:[%s161 + $0x4] sm:$0xf]
    %v164 = vld [vmem:[%s161 + $0x8] sm:$0xf]
    %v165 = vld [vmem:[%s161 + $0xc] sm:$0xf]
    %v166 = vld [vmem:[%s161 + $0x10] sm:$0xf]
    %v167 = vld [vmem:[%s161 + $0x14] sm:$0xf]
    %v168 = vld [vmem:[%s161 + $0x18] sm:$0xf]
    %v169 = vld [vmem:[%s161 + $0x1c] sm:$0xf]
    %v170 = vld [vmem:[%s161 + $0x20] sm:$0xf]
    %v171 = vld [vmem:[%s161 + $0x24] sm:$0xf]
    %v172 = vld [vmem:[%s161 + $0x28] sm:$0xf]
    %v173 = vld [vmem:[%s161 + $0x2c] sm:$0xf]
    %v174 = vld [vmem:[%s161 + $0x30] sm:$0xf]
    %v175 = vld [vmem:[%s161 + $0x34] sm:$0xf]
    %v176 = vld [vmem:[%s161 + $0x38] sm:$0xf]
    %v177 = vld [vmem:[%s161 + $0x3c] sm:$0xf]
    %s178 = scalar_lea.vmem %s3, 1
    %v179 = vld [vmem:[%s178] sm:$0x1]
    %v181 = vlaneseq
    %v182 = vshrl.u32 %v181, 7
    %v183 = vsub.s32 0, %v182
    %v184 = vrot.slane %v179, %v183
    %v202 = vunpack.c.l.b16 %v162
    %v203 = vunpack.c.l.b16 %v163
    %v204 = vunpack.c.l.b16 %v164
    %v205 = vunpack.c.l.b16 %v165
    %v206 = vunpack.c.l.b16 %v166
    %v207 = vunpack.c.l.b16 %v167
    %v208 = vunpack.c.l.b16 %v168
    %v209 = vunpack.c.l.b16 %v169
    %v210 = vunpack.c.l.b16 %v170
    %v211 = vunpack.c.l.b16 %v171
    %v212 = vunpack.c.l.b16 %v172
    %v213 = vunpack.c.l.b16 %v173
    %v214 = vunpack.c.l.b16 %v174
    %v215 = vunpack.c.l.b16 %v175
    %v216 = vunpack.c.l.b16 %v176
    %v217 = vunpack.c.l.b16 %v177
    %v218 = vpack.c.b16 %v203, %v202
    %v219 = vpack.c.b16 %v205, %v204
    %v220 = vpack.c.b16 %v207, %v206
    %v221 = vpack.c.b16 %v209, %v208
    %v222 = vpack.c.b16 %v211, %v210
    %v223 = vpack.c.b16 %v213, %v212
    %v224 = vpack.c.b16 %v215, %v214
    %v225 = vpack.c.b16 %v217, %v216
    %234 = vmatprep.subr.bf16.mxu0 0
    %235 = vmatpush1.bf16.msra.mxu0 %v218
    %236 = vmatprep.subr.bf16.mxu0 0
    %237 = vmatpush1.bf16.msra.mxu0 %v219
    %238 = vmatprep.subr.bf16.mxu0 0
    %239 = vmatpush1.bf16.msra.mxu0 %v220
    %240 = vmatprep.subr.bf16.mxu0 0
    %241 = vmatpush1.bf16.msra.mxu0 %v221
    %242 = vmatprep.subr.bf16.mxu0 0
    %243 = vmatpush1.bf16.msra.mxu0 %v222
    %244 = vmatprep.subr.bf16.mxu0 0
    %245 = vmatpush1.bf16.msra.mxu0 %v223
    %246 = vmatprep.subr.bf16.mxu0 0
    %247 = vmatpush1.bf16.msra.mxu0 %v224
    %248 = vmatprep.subr.bf16.mxu0 0
    %249 = vmatpush1.bf16.msra.mxu0 %v225
    %250 = vmatprep.subr.bf16.mxu0 0
    %251 = vmatpush1.bf16.msra.mxu0 0
    %252 = vmatprep.subr.bf16.mxu0 0
    %253 = vmatpush1.bf16.msra.mxu0 0
    %254 = vmatprep.subr.bf16.mxu0 0
    %255 = vmatpush1.bf16.msra.mxu0 0
    %256 = vmatprep.subr.bf16.mxu0 0
    %257 = vmatpush1.bf16.msra.mxu0 0
    %258 = vmatprep.subr.bf16.mxu0 0
    %259 = vmatpush1.bf16.msra.mxu0 0
    %260 = vmatprep.subr.bf16.mxu0 0
    %261 = vmatpush1.bf16.msra.mxu0 0
    %262 = vmatprep.subr.bf16.mxu0 0
    %263 = vmatpush1.bf16.msra.mxu0 0
    %264 = vmatprep.subr.bf16.mxu0 0
    %265 = vmatpush1.bf16.msra.mxu0 0
    %266 = vmatprep.mubr.bf16.mxu0 0
    %267 = vmatmul.mubr.bf16.gmra.mrb[0].mxu0 %v160
    %v268 = vpop.f32.mrb[0].mxu0
    %v269 = vadd.f32 %v184, %v268
    %v270 = vpop.f32.mrb[0].mxu0
    %v271 = vpop.f32.mrb[0].mxu0
    %v272 = vpop.f32.mrb[0].mxu0
    %273 = vdwg.mxu0
    %v274 = vtanh.pop %v269
    %v275 = vpack.c.bf16 %v274, %v274
    %s276 = scalar_lea.vmem [#allocation2], 128
    %v277 = vld [vmem:[%s276] sm:$0xf]
    %v278 = vld [vmem:[%s276 + $0x4] sm:$0xf]
    %v279 = vld [vmem:[%s276 + $0x8] sm:$0xf]
    %v280 = vld [vmem:[%s276 + $0xc] sm:$0xf]
    %v281 = vld [vmem:[%s276 + $0x10] sm:$0xf]
    %v282 = vld [vmem:[%s276 + $0x14] sm:$0xf]
    %v283 = vld [vmem:[%s276 + $0x18] sm:$0xf]
    %v284 = vld [vmem:[%s276 + $0x1c] sm:$0xf]
    %v285 = vld [vmem:[%s276 + $0x20] sm:$0xf]
    %v286 = vld [vmem:[%s276 + $0x24] sm:$0xf]
    %v287 = vld [vmem:[%s276 + $0x28] sm:$0xf]
    %v288 = vld [vmem:[%s276 + $0x2c] sm:$0xf]
    %v289 = vld [vmem:[%s276 + $0x30] sm:$0xf]
    %v290 = vld [vmem:[%s276 + $0x34] sm:$0xf]
    %v291 = vld [vmem:[%s276 + $0x38] sm:$0xf]
    %v292 = vld [vmem:[%s276 + $0x3c] sm:$0xf]
    %s293 = scalar_lea.vmem %s3, 2
    %v294 = vld [vmem:[%s293] sm:$0x1]
    %v296 = vlaneseq
    %v297 = vshrl.u32 %v296, 7
    %v298 = vsub.s32 0, %v297
    %v299 = vrot.slane %v294, %v298
    %v317 = vunpack.c.l.b16 %v277
    %v318 = vunpack.c.l.b16 %v278
    %v319 = vunpack.c.l.b16 %v279
    %v320 = vunpack.c.l.b16 %v280
    %v321 = vunpack.c.l.b16 %v281
    %v322 = vunpack.c.l.b16 %v282
    %v323 = vunpack.c.l.b16 %v283
    %v324 = vunpack.c.l.b16 %v284
    %v325 = vunpack.c.l.b16 %v285
    %v326 = vunpack.c.l.b16 %v286
    %v327 = vunpack.c.l.b16 %v287
    %v328 = vunpack.c.l.b16 %v288
    %v329 = vunpack.c.l.b16 %v289
    %v330 = vunpack.c.l.b16 %v290
    %v331 = vunpack.c.l.b16 %v291
    %v332 = vunpack.c.l.b16 %v292
    %v333 = vpack.c.b16 %v318, %v317
    %v334 = vpack.c.b16 %v320, %v319
    %v335 = vpack.c.b16 %v322, %v321
    %v336 = vpack.c.b16 %v324, %v323
    %v337 = vpack.c.b16 %v326, %v325
    %v338 = vpack.c.b16 %v328, %v327
    %v339 = vpack.c.b16 %v330, %v329
    %v340 = vpack.c.b16 %v332, %v331
    %349 = vmatprep.subr.bf16.mxu0 0
    %350 = vmatpush1.bf16.msra.mxu0 %v333
    %351 = vmatprep.subr.bf16.mxu0 0
    %352 = vmatpush1.bf16.msra.mxu0 %v334
    %353 = vmatprep.subr.bf16.mxu0 0
    %354 = vmatpush1.bf16.msra.mxu0 %v335
    %355 = vmatprep.subr.bf16.mxu0 0
    %356 = vmatpush1.bf16.msra.mxu0 %v336
    %357 = vmatprep.subr.bf16.mxu0 0
    %358 = vmatpush1.bf16.msra.mxu0 %v337
    %359 = vmatprep.subr.bf16.mxu0 0
    %360 = vmatpush1.bf16.msra.mxu0 %v338
    %361 = vmatprep.subr.bf16.mxu0 0
    %362 = vmatpush1.bf16.msra.mxu0 %v339
    %363 = vmatprep.subr.bf16.mxu0 0
    %364 = vmatpush1.bf16.msra.mxu0 %v340
    %365 = vmatprep.subr.bf16.mxu0 0
    %366 = vmatpush1.bf16.msra.mxu0 0
    %367 = vmatprep.subr.bf16.mxu0 0
    %368 = vmatpush1.bf16.msra.mxu0 0
    %369 = vmatprep.subr.bf16.mxu0 0
    %370 = vmatpush1.bf16.msra.mxu0 0
    %371 = vmatprep.subr.bf16.mxu0 0
    %372 = vmatpush1.bf16.msra.mxu0 0
    %373 = vmatprep.subr.bf16.mxu0 0
    %374 = vmatpush1.bf16.msra.mxu0 0
    %375 = vmatprep.subr.bf16.mxu0 0
    %376 = vmatpush1.bf16.msra.mxu0 0
    %377 = vmatprep.subr.bf16.mxu0 0
    %378 = vmatpush1.bf16.msra.mxu0 0
    %379 = vmatprep.subr.bf16.mxu0 0
    %380 = vmatpush1.bf16.msra.mxu0 0
    %381 = vmatprep.mubr.bf16.mxu0 0
    %382 = vmatmul.mubr.bf16.gmra.mrb[0].mxu0 %v275
    %v383 = vpop.f32.mrb[0].mxu0
    %v384 = vadd.f32 %v299, %v383
    %v385 = vpop.f32.mrb[0].mxu0
    %v386 = vpop.f32.mrb[0].mxu0
    %v387 = vpop.f32.mrb[0].mxu0
    %388 = vdwg.mxu0
    %s389 = scalar_lea.vmem [#allocation2], 192
    %v390 = vld [vmem:[%s389] sm:$0xf]
    %v391 = vld [vmem:[%s389 + $0x4] sm:$0xf]
    %v392 = vld [vmem:[%s389 + $0x8] sm:$0xf]
    %v393 = vld [vmem:[%s389 + $0xc] sm:$0xf]
    %v394 = vld [vmem:[%s389 + $0x10] sm:$0xf]
    %v395 = vld [vmem:[%s389 + $0x14] sm:$0xf]
    %v396 = vld [vmem:[%s389 + $0x18] sm:$0xf]
    %v397 = vld [vmem:[%s389 + $0x1c] sm:$0xf]
    %v398 = vld [vmem:[%s389 + $0x20] sm:$0xf]
    %v399 = vld [vmem:[%s389 + $0x24] sm:$0xf]
    %v400 = vld [vmem:[%s389 + $0x28] sm:$0xf]
    %v401 = vld [vmem:[%s389 + $0x2c] sm:$0xf]
    %v402 = vld [vmem:[%s389 + $0x30] sm:$0xf]
    %v403 = vld [vmem:[%s389 + $0x34] sm:$0xf]
    %v404 = vld [vmem:[%s389 + $0x38] sm:$0xf]
    %v405 = vld [vmem:[%s389 + $0x3c] sm:$0xf]
    %v406 = vpack.c.bf16 %v384, %v384
    %s407 = scalar_lea.vmem [#allocation2], 256
    %v408 = vld [vmem:[%s407] sm:$0xf]
    %v409 = vld [vmem:[%s407 + $0x4] sm:$0xf]
    %v410 = vld [vmem:[%s407 + $0x8] sm:$0xf]
    %v411 = vld [vmem:[%s407 + $0xc] sm:$0xf]
    %v412 = vld [vmem:[%s407 + $0x10] sm:$0xf]
    %v413 = vld [vmem:[%s407 + $0x14] sm:$0xf]
    %v414 = vld [vmem:[%s407 + $0x18] sm:$0xf]
    %v415 = vld [vmem:[%s407 + $0x1c] sm:$0xf]
    %v416 = vld [vmem:[%s407 + $0x20] sm:$0xf]
    %v417 = vld [vmem:[%s407 + $0x24] sm:$0xf]
    %v418 = vld [vmem:[%s407 + $0x28] sm:$0xf]
    %v419 = vld [vmem:[%s407 + $0x2c] sm:$0xf]
    %v420 = vld [vmem:[%s407 + $0x30] sm:$0xf]
    %v421 = vld [vmem:[%s407 + $0x34] sm:$0xf]
    %v422 = vld [vmem:[%s407 + $0x38] sm:$0xf]
    %v423 = vld [vmem:[%s407 + $0x3c] sm:$0xf]
    %v440 = vunpack.c.l.b16 %v408
    %v441 = vunpack.c.l.b16 %v409
    %v442 = vunpack.c.l.b16 %v410
    %v443 = vunpack.c.l.b16 %v411
    %v444 = vunpack.c.l.b16 %v412
    %v445 = vunpack.c.l.b16 %v413
    %v446 = vunpack.c.l.b16 %v414
    %v447 = vunpack.c.l.b16 %v415
    %v448 = vunpack.c.l.b16 %v416
    %v449 = vunpack.c.l.b16 %v417
    %v450 = vunpack.c.l.b16 %v418
    %v451 = vunpack.c.l.b16 %v419
    %v452 = vunpack.c.l.b16 %v420
    %v453 = vunpack.c.l.b16 %v421
    %v454 = vunpack.c.l.b16 %v422
    %v455 = vunpack.c.l.b16 %v423
    %v456 = vpack.c.b16 %v441, %v440
    %v457 = vpack.c.b16 %v443, %v442
    %v458 = vpack.c.b16 %v445, %v444
    %v459 = vpack.c.b16 %v447, %v446
    %v460 = vpack.c.b16 %v449, %v448
    %v461 = vpack.c.b16 %v451, %v450
    %v462 = vpack.c.b16 %v453, %v452
    %v463 = vpack.c.b16 %v455, %v454
    %472 = vmatprep.subr.bf16.mxu0 0
    %473 = vmatpush1.bf16.msra.mxu0 %v456
    %474 = vmatprep.subr.bf16.mxu0 0
    %475 = vmatpush1.bf16.msra.mxu0 %v457
    %476 = vmatprep.subr.bf16.mxu0 0
    %477 = vmatpush1.bf16.msra.mxu0 %v458
    %478 = vmatprep.subr.bf16.mxu0 0
    %479 = vmatpush1.bf16.msra.mxu0 %v459
    %480 = vmatprep.subr.bf16.mxu0 0
    %481 = vmatpush1.bf16.msra.mxu0 %v460
    %482 = vmatprep.subr.bf16.mxu0 0
    %483 = vmatpush1.bf16.msra.mxu0 %v461
    %484 = vmatprep.subr.bf16.mxu0 0
    %485 = vmatpush1.bf16.msra.mxu0 %v462
    %486 = vmatprep.subr.bf16.mxu0 0
    %487 = vmatpush1.bf16.msra.mxu0 %v463
    %488 = vmatprep.subr.bf16.mxu0 0
    %489 = vmatpush1.bf16.msra.mxu0 0
    %490 = vmatprep.subr.bf16.mxu0 0
    %491 = vmatpush1.bf16.msra.mxu0 0
    %492 = vmatprep.subr.bf16.mxu0 0
    %493 = vmatpush1.bf16.msra.mxu0 0
    %494 = vmatprep.subr.bf16.mxu0 0
    %495 = vmatpush1.bf16.msra.mxu0 0
    %496 = vmatprep.subr.bf16.mxu0 0
    %497 = vmatpush1.bf16.msra.mxu0 0
    %498 = vmatprep.subr.bf16.mxu0 0
    %499 = vmatpush1.bf16.msra.mxu0 0
    %500 = vmatprep.subr.bf16.mxu0 0
    %501 = vmatpush1.bf16.msra.mxu0 0
    %502 = vmatprep.subr.bf16.mxu0 0
    %503 = vmatpush1.bf16.msra.mxu0 0
    %504 = vmatprep.mubr.bf16.mxu0 0
    %505 = vmatmul.mubr.bf16.gmra.mrb[0].mxu0 %v406
    %v506 = vpop.f32.mrb[0].mxu0
    %v507 = vadd.f32 0.0, %v506
    %v508 = vpop.f32.mrb[0].mxu0
    %v509 = vpop.f32.mrb[0].mxu0
    %v510 = vpop.f32.mrb[0].mxu0
    %511 = vdwg.mxu0
    %v528 = vunpack.c.l.b16 %v390
    %v529 = vunpack.c.l.b16 %v391
    %v530 = vunpack.c.l.b16 %v392
    %v531 = vunpack.c.l.b16 %v393
    %v532 = vunpack.c.l.b16 %v394
    %v533 = vunpack.c.l.b16 %v395
    %v534 = vunpack.c.l.b16 %v396
    %v535 = vunpack.c.l.b16 %v397
    %v536 = vunpack.c.l.b16 %v398
    %v537 = vunpack.c.l.b16 %v399
    %v538 = vunpack.c.l.b16 %v400
    %v539 = vunpack.c.l.b16 %v401
    %v540 = vunpack.c.l.b16 %v402
    %v541 = vunpack.c.l.b16 %v403
    %v542 = vunpack.c.l.b16 %v404
    %v543 = vunpack.c.l.b16 %v405
    %v544 = vpack.c.b16 %v529, %v528
    %v545 = vpack.c.b16 %v531, %v530
    %v546 = vpack.c.b16 %v533, %v532
    %v547 = vpack.c.b16 %v535, %v534
    %v548 = vpack.c.b16 %v537, %v536
    %v549 = vpack.c.b16 %v539, %v538
    %v550 = vpack.c.b16 %v541, %v540
    %v551 = vpack.c.b16 %v543, %v542
    %560 = vmatprep.subr.bf16.mxu0 0
    %561 = vmatpush1.bf16.msra.mxu0 %v544
    %562 = vmatprep.subr.bf16.mxu0 0
    %563 = vmatpush1.bf16.msra.mxu0 %v545
    %564 = vmatprep.subr.bf16.mxu0 0
    %565 = vmatpush1.bf16.msra.mxu0 %v546
    %566 = vmatprep.subr.bf16.mxu0 0
    %567 = vmatpush1.bf16.msra.mxu0 %v547
    %568 = vmatprep.subr.bf16.mxu0 0
    %569 = vmatpush1.bf16.msra.mxu0 %v548
    %570 = vmatprep.subr.bf16.mxu0 0
    %571 = vmatpush1.bf16.msra.mxu0 %v549
    %572 = vmatprep.subr.bf16.mxu0 0
    %573 = vmatpush1.bf16.msra.mxu0 %v550
    %574 = vmatprep.subr.bf16.mxu0 0
    %575 = vmatpush1.bf16.msra.mxu0 %v551
    %576 = vmatprep.subr.bf16.mxu0 0
    %577 = vmatpush1.bf16.msra.mxu0 0
    %578 = vmatprep.subr.bf16.mxu0 0
    %579 = vmatpush1.bf16.msra.mxu0 0
    %580 = vmatprep.subr.bf16.mxu0 0
    %581 = vmatpush1.bf16.msra.mxu0 0
    %582 = vmatprep.subr.bf16.mxu0 0
    %583 = vmatpush1.bf16.msra.mxu0 0
    %584 = vmatprep.subr.bf16.mxu0 0
    %585 = vmatpush1.bf16.msra.mxu0 0
    %586 = vmatprep.subr.bf16.mxu0 0
    %587 = vmatpush1.bf16.msra.mxu0 0
    %588 = vmatprep.subr.bf16.mxu0 0
    %589 = vmatpush1.bf16.msra.mxu0 0
    %590 = vmatprep.subr.bf16.mxu0 0
    %591 = vmatpush1.bf16.msra.mxu0 0
    %592 = vmatprep.mubr.bf16.mxu0 0
    %593 = vmatmul.mubr.bf16.gmra.mrb[0].mxu0 %v46
    %v594 = vpop.f32.mrb[0].mxu0
    %v595 = vadd.f32 %v507, %v594
    %v596 = vpop.f32.mrb[0].mxu0
    %v597 = vpop.f32.mrb[0].mxu0
    %v598 = vpop.f32.mrb[0].mxu0
    %599 = vdwg.mxu0
    %s600 = scalar_lea.vmem %s3, 3
    %v601 = vld [vmem:[%s600] sm:$0x1]
    %v603 = vlaneseq
    %v604 = vshrl.u32 %v603, 7
    %v605 = vsub.s32 0, %v604
    %v606 = vrot.slane %v601, %v605
    %v608 = vadd.f32 %v595, %v606
    %v609 = vtanh.pop %v608
    %v610 = vpack.c.bf16 %v609, %v609
    %s611 = scalar_lea.vmem [#allocation2], 320
    %v612 = vld [vmem:[%s611] sm:$0xf]
    %v613 = vld [vmem:[%s611 + $0x4] sm:$0xf]
    %v614 = vld [vmem:[%s611 + $0x8] sm:$0xf]
    %v615 = vld [vmem:[%s611 + $0xc] sm:$0xf]
    %v616 = vld [vmem:[%s611 + $0x10] sm:$0xf]
    %v617 = vld [vmem:[%s611 + $0x14] sm:$0xf]
    %v618 = vld [vmem:[%s611 + $0x18] sm:$0xf]
    %v619 = vld [vmem:[%s611 + $0x1c] sm:$0xf]
    %v620 = vld [vmem:[%s611 + $0x20] sm:$0xf]
    %v621 = vld [vmem:[%s611 + $0x24] sm:$0xf]
    %v622 = vld [vmem:[%s611 + $0x28] sm:$0xf]
    %v623 = vld [vmem:[%s611 + $0x2c] sm:$0xf]
    %v624 = vld [vmem:[%s611 + $0x30] sm:$0xf]
    %v625 = vld [vmem:[%s611 + $0x34] sm:$0xf]
    %v626 = vld [vmem:[%s611 + $0x38] sm:$0xf]
    %v627 = vld [vmem:[%s611 + $0x3c] sm:$0xf]
    %s628 = scalar_lea.vmem %s3, 4
    %v629 = vld [vmem:[%s628] sm:$0x1]
    %v631 = vlaneseq
    %v632 = vshrl.u32 %v631, 7
    %v633 = vsub.s32 0, %v632
    %v634 = vrot.slane %v629, %v633
    %v652 = vunpack.c.l.b16 %v612
    %v653 = vunpack.c.l.b16 %v613
    %v654 = vunpack.c.l.b16 %v614
    %v655 = vunpack.c.l.b16 %v615
    %v656 = vunpack.c.l.b16 %v616
    %v657 = vunpack.c.l.b16 %v617
    %v658 = vunpack.c.l.b16 %v618
    %v659 = vunpack.c.l.b16 %v619
    %v660 = vunpack.c.l.b16 %v620
    %v661 = vunpack.c.l.b16 %v621
    %v662 = vunpack.c.l.b16 %v622
    %v663 = vunpack.c.l.b16 %v623
    %v664 = vunpack.c.l.b16 %v624
    %v665 = vunpack.c.l.b16 %v625
    %v666 = vunpack.c.l.b16 %v626
    %v667 = vunpack.c.l.b16 %v627
    %v668 = vpack.c.b16 %v653, %v652
    %v669 = vpack.c.b16 %v655, %v654
    %v670 = vpack.c.b16 %v657, %v656
    %v671 = vpack.c.b16 %v659, %v658
    %v672 = vpack.c.b16 %v661, %v660
    %v673 = vpack.c.b16 %v663, %v662
    %v674 = vpack.c.b16 %v665, %v664
    %v675 = vpack.c.b16 %v667, %v666
    %684 = vmatprep.subr.bf16.mxu0 0
    %685 = vmatpush1.bf16.msra.mxu0 %v668
    %686 = vmatprep.subr.bf16.mxu0 0
    %687 = vmatpush1.bf16.msra.mxu0 %v669
    %688 = vmatprep.subr.bf16.mxu0 0
    %689 = vmatpush1.bf16.msra.mxu0 %v670
    %690 = vmatprep.subr.bf16.mxu0 0
    %691 = vmatpush1.bf16.msra.mxu0 %v671
    %692 = vmatprep.subr.bf16.mxu0 0
    %693 = vmatpush1.bf16.msra.mxu0 %v672
    %694 = vmatprep.subr.bf16.mxu0 0
    %695 = vmatpush1.bf16.msra.mxu0 %v673
    %696 = vmatprep.subr.bf16.mxu0 0
    %697 = vmatpush1.bf16.msra.mxu0 %v674
    %698 = vmatprep.subr.bf16.mxu0 0
    %699 = vmatpush1.bf16.msra.mxu0 %v675
    %700 = vmatprep.subr.bf16.mxu0 0
    %701 = vmatpush1.bf16.msra.mxu0 0
    %702 = vmatprep.subr.bf16.mxu0 0
    %703 = vmatpush1.bf16.msra.mxu0 0
    %704 = vmatprep.subr.bf16.mxu0 0
    %705 = vmatpush1.bf16.msra.mxu0 0
    %706 = vmatprep.subr.bf16.mxu0 0
    %707 = vmatpush1.bf16.msra.mxu0 0
    %708 = vmatprep.subr.bf16.mxu0 0
    %709 = vmatpush1.bf16.msra.mxu0 0
    %710 = vmatprep.subr.bf16.mxu0 0
    %711 = vmatpush1.bf16.msra.mxu0 0
    %712 = vmatprep.subr.bf16.mxu0 0
    %713 = vmatpush1.bf16.msra.mxu0 0
    %714 = vmatprep.subr.bf16.mxu0 0
    %715 = vmatpush1.bf16.msra.mxu0 0
    %716 = vmatprep.mubr.bf16.mxu0 0
    %717 = vmatmul.mubr.bf16.gmra.mrb[0].mxu0 %v610
    %v718 = vpop.f32.mrb[0].mxu0
    %v719 = vadd.f32 %v634, %v718
    %v720 = vpop.f32.mrb[0].mxu0
    %v721 = vpop.f32.mrb[0].mxu0
    %v722 = vpop.f32.mrb[0].mxu0
    %723 = vdwg.mxu0
    %v724 = vtanh.pop %v719
    %v725 = vpack.c.bf16 %v724, %v724
    %s726 = scalar_lea.vmem [#allocation2], 384
    %v727 = vld [vmem:[%s726] sm:$0xf]
    %v728 = vld [vmem:[%s726 + $0x4] sm:$0xf]
    %v729 = vld [vmem:[%s726 + $0x8] sm:$0xf]
    %v730 = vld [vmem:[%s726 + $0xc] sm:$0xf]
    %v731 = vld [vmem:[%s726 + $0x10] sm:$0xf]
    %v732 = vld [vmem:[%s726 + $0x14] sm:$0xf]
    %v733 = vld [vmem:[%s726 + $0x18] sm:$0xf]
    %v734 = vld [vmem:[%s726 + $0x1c] sm:$0xf]
    %v735 = vld [vmem:[%s726 + $0x20] sm:$0xf]
    %v736 = vld [vmem:[%s726 + $0x24] sm:$0xf]
    %v737 = vld [vmem:[%s726 + $0x28] sm:$0xf]
    %v738 = vld [vmem:[%s726 + $0x2c] sm:$0xf]
    %v739 = vld [vmem:[%s726 + $0x30] sm:$0xf]
    %v740 = vld [vmem:[%s726 + $0x34] sm:$0xf]
    %v741 = vld [vmem:[%s726 + $0x38] sm:$0xf]
    %v742 = vld [vmem:[%s726 + $0x3c] sm:$0xf]
    %s743 = scalar_lea.vmem %s3, 5
    %v744 = vld [vmem:[%s743] sm:$0x1]
    %v746 = vlaneseq
    %v747 = vshrl.u32 %v746, 7
    %v748 = vsub.s32 0, %v747
    %v749 = vrot.slane %v744, %v748
    %v767 = vunpack.c.l.b16 %v727
    %v768 = vunpack.c.l.b16 %v728
    %v769 = vunpack.c.l.b16 %v729
    %v770 = vunpack.c.l.b16 %v730
    %v771 = vunpack.c.l.b16 %v731
    %v772 = vunpack.c.l.b16 %v732
    %v773 = vunpack.c.l.b16 %v733
    %v774 = vunpack.c.l.b16 %v734
    %v775 = vunpack.c.l.b16 %v735
    %v776 = vunpack.c.l.b16 %v736
    %v777 = vunpack.c.l.b16 %v737
    %v778 = vunpack.c.l.b16 %v738
    %v779 = vunpack.c.l.b16 %v739
    %v780 = vunpack.c.l.b16 %v740
    %v781 = vunpack.c.l.b16 %v741
    %v782 = vunpack.c.l.b16 %v742
    %v783 = vpack.c.b16 %v768, %v767
    %v784 = vpack.c.b16 %v770, %v769
    %v785 = vpack.c.b16 %v772, %v771
    %v786 = vpack.c.b16 %v774, %v773
    %v787 = vpack.c.b16 %v776, %v775
    %v788 = vpack.c.b16 %v778, %v777
    %v789 = vpack.c.b16 %v780, %v779
    %v790 = vpack.c.b16 %v782, %v781
    %799 = vmatprep.subr.bf16.mxu0 0
    %800 = vmatpush1.bf16.msra.mxu0 %v783
    %801 = vmatprep.subr.bf16.mxu0 0
    %802 = vmatpush1.bf16.msra.mxu0 %v784
    %803 = vmatprep.subr.bf16.mxu0 0
    %804 = vmatpush1.bf16.msra.mxu0 %v785
    %805 = vmatprep.subr.bf16.mxu0 0
    %806 = vmatpush1.bf16.msra.mxu0 %v786
    %807 = vmatprep.subr.bf16.mxu0 0
    %808 = vmatpush1.bf16.msra.mxu0 %v787
    %809 = vmatprep.subr.bf16.mxu0 0
    %810 = vmatpush1.bf16.msra.mxu0 %v788
    %811 = vmatprep.subr.bf16.mxu0 0
    %812 = vmatpush1.bf16.msra.mxu0 %v789
    %813 = vmatprep.subr.bf16.mxu0 0
    %814 = vmatpush1.bf16.msra.mxu0 %v790
    %815 = vmatprep.subr.bf16.mxu0 0
    %816 = vmatpush1.bf16.msra.mxu0 0
    %817 = vmatprep.subr.bf16.mxu0 0
    %818 = vmatpush1.bf16.msra.mxu0 0
    %819 = vmatprep.subr.bf16.mxu0 0
    %820 = vmatpush1.bf16.msra.mxu0 0
    %821 = vmatprep.subr.bf16.mxu0 0
    %822 = vmatpush1.bf16.msra.mxu0 0
    %823 = vmatprep.subr.bf16.mxu0 0
    %824 = vmatpush1.bf16.msra.mxu0 0
    %825 = vmatprep.subr.bf16.mxu0 0
    %826 = vmatpush1.bf16.msra.mxu0 0
    %827 = vmatprep.subr.bf16.mxu0 0
    %828 = vmatpush1.bf16.msra.mxu0 0
    %829 = vmatprep.subr.bf16.mxu0 0
    %830 = vmatpush1.bf16.msra.mxu0 0
    %831 = vmatprep.mubr.bf16.mxu0 0
    %832 = vmatmul.mubr.bf16.gmra.mrb[0].mxu0 %v725
    %v833 = vpop.f32.mrb[0].mxu0
    %v834 = vadd.f32 %v749, %v833
    %v835 = vpop.f32.mrb[0].mxu0
    %v836 = vpop.f32.mrb[0].mxu0
    %v837 = vpop.f32.mrb[0].mxu0
    %838 = vdwg.mxu0
    %v839 = vpack.c.bf16 %v834, %v834
    %840 = vst [vmem:[#allocation5] sm:$0xf] %v839
    // Predicated region
    $region22: #{tpu_custom_call.1} parent=1 // pred_check
      _
    $region23: #{tpu_custom_call.1} parent=1 // pred_check_branch
      %842 = sbr.rel (0) target = $region25
    $region24: #{tpu_custom_call.1} parent=1 // pred_region
      %s844 = ssub.s32 64, 64
      %845 = vsyncadd [#allocation4], %s844
      %s847 = sshll.u32 [#allocation5], 4
      %s848 = int_to_ptr.vmem [resolvable:$true] %s847
      %850 = dma.vmem_to_hbm [thread:$0]  %s848, 64, %s4, [#allocation4]
    $region25: #{tpu_custom_call.1} parent=1 // pred_fallthru
      _
    // Predicated region
    $region26: #{tpu_custom_call.1} parent=1 // pred_check
      _
    $region27: #{tpu_custom_call.1} parent=1 // pred_check_branch
      %852 = sbr.rel (0) target = $region29
    $region28: #{tpu_custom_call.1} parent=1 // pred_region
      %853 = dma.done [#allocation4], 64
    $region29: #{tpu_custom_call.1} parent=1 // pred_fallthru
      _
    %854 = vsyncpa [#allocation3], 1
    %855 = vsyncpa [#allocation4], 1

</llo_original>
